<compile_context>
chip_gen: v5e
topology: v5e:2x2
jax: 0.10.0
libtpu: 0.0.40
codegen_flags: <defaults>
</compile_context>

<pallas_src>
import functools
import math

import jax
import jax.numpy as jnp
from jax.experimental import pallas as pl
from jax.experimental.pallas import tpu as pltpu


def _round_up(x, m):
    return ((x + m - 1) // m) * m


def _cdiv(a, b):
    return -(-a // b)


def _layernorm_kernel(w_ref, b_ref, x_ref, o_ref, *, eps, inv_d, inv_nm1):
    # w_ref, b_ref: (1,) scalars in SMEM; x_ref, o_ref: (tile_r, D) tiles in VMEM.
    w = w_ref[0]
    b = b_ref[0]

    x = x_ref[...].astype(jnp.float32)
    mu = jnp.sum(x, axis=-1, keepdims=True) * inv_d              # mean via folded constant
    diff = x - mu
    # torch.std default: unbiased (divide by N-1); fold 1/(N-1) as a constant multiply.
    var = jnp.sum(diff * diff, axis=-1, keepdims=True) * inv_nm1
    sigma = jnp.sqrt(var)

    # Replicate the module exactly: (x - mu) / (sigma + eps) * .bias + .weight
    # (bias multiplies, weight adds — intentionally swapped vs. standard LayerNorm).
    # Exact per-row divide: cost is fully hidden under the HBM DMA on this mem-bound kernel.
    scale = b / (sigma + eps)                                     # shape (tile_r, 1)
    o_ref[...] = (diff * scale + w).astype(o_ref.dtype)


def layernorm_pallas(x, weight, bias, eps=1e-5):
    orig_shape = x.shape
    d = orig_shape[-1]
    r = math.prod(orig_shape[:-1]) if len(orig_shape) > 1 else 1
    x2d = x.reshape(r, d)

    itemsize = jnp.dtype(x.dtype).itemsize
    sublane = max(8, 32 // itemsize)            # 8 for f32, 16 for bf16, 32 for int8/fp8

    # Largest row tile whose block is <= ~8 MiB: double-buffered in + out (4 buffers)
    # then stays <= ~32 MiB, under the 48 MiB scoped request with headroom for Mosaic
    # scratch — safe on v7x (64 MiB physical) and comfortably inside v5e/v6e (128 MiB).
    target_block_bytes = 8 * 1024 * 1024
    row_bytes = d * itemsize
    max_tile_r = max(sublane, ((target_block_bytes // row_bytes) // sublane) * sublane)

    r_sub = _round_up(r, sublane)
    # Enough steps to respect the tile budget, and >= 2 when possible so the "parallel"
    # grid axis shards across both v7x TensorCores (cost on 1-TC chips: ~0.35 us).
    n_steps = max(_cdiv(r_sub, max_tile_r), 2 if r_sub >= 2 * sublane else 1)
    # Derive the tile from the step count (not the other way around) so padding stays
    # bounded by a few sublane groups instead of up to tile_r - 1 dead rows.
    tile_r = _round_up(_cdiv(r_sub, n_steps), sublane)
    n_steps = _cdiv(r_sub, tile_r)
    r_pad = n_steps * tile_r

    if r_pad != r:
        # Zero rows are harmless: diff = 0 -> output = weight; sliced off below.
        x2d = jnp.pad(x2d, ((0, r_pad - r), (0, 0)))

    kernel = functools.partial(
        _layernorm_kernel,
        eps=float(eps),
        inv_d=1.0 / d,
        inv_nm1=1.0 / max(d - 1, 1),
    )

    out2d = pl.pallas_call(
        kernel,
        out_shape=jax.ShapeDtypeStruct((r_pad, d), x.dtype),
        grid=(n_steps,),
        in_specs=[
            pl.BlockSpec(memory_space=pltpu.MemorySpace.SMEM),    # weight (1,)
            pl.BlockSpec(memory_space=pltpu.MemorySpace.SMEM),    # bias   (1,)
            pl.BlockSpec((tile_r, d), lambda i: (i, 0)),          # x row tile
        ],
        out_specs=pl.BlockSpec((tile_r, d), lambda i: (i, 0)),
        compiler_params=pltpu.CompilerParams(
            dimension_semantics=("parallel",),                    # megacore on v7x
            vmem_limit_bytes=48 * 1024 * 1024,                    # headroom under v7x's 64 MiB
        ),
    )(weight, bias, x2d)

    if r_pad != r:
        out2d = out2d[:r]
    return out2d.reshape(orig_shape)


def layernorm_ref(x, weight, bias, eps=1e-5):
    xf = x.astype(jnp.float32)
    mu = jnp.mean(xf, axis=-1, keepdims=True)
    diff = xf - mu
    var = jnp.sum(diff * diff, axis=-1, keepdims=True) / (x.shape[-1] - 1)
    sigma = jnp.sqrt(var)
    return ((diff / (sigma + eps)) * bias[0] + weight[0]).astype(x.dtype)


if __name__ == "__main__":
    key = jax.random.PRNGKey(0)
    x = jax.random.uniform(key, (5, 10, 20), dtype=jnp.float32)  # matches torch.rand((5,10,20))

    # Validation with NONZERO affine params so the normalization math is actually exercised.
    weight = jnp.array([0.3], dtype=jnp.float32)
    bias = jnp.array([1.7], dtype=jnp.float32)

    out = layernorm_pallas(x, weight, bias, eps=1e-5)
    out = jax.block_until_ready(out)
    ref = layernorm_ref(x, weight, bias, eps=1e-5)
    assert out.shape == x.shape and out.dtype == x.dtype
    # Exact divide in the kernel -> tight tolerances (only folded 1/D, 1/(D-1) ulp noise).
    assert jnp.allclose(out, ref, atol=1e-5, rtol=1e-5), "mismatch vs reference (nonzero affine)"

    # Module-default parameters (__init__ uses zeros of shape (1,)).
    w0 = jnp.zeros((1,), dtype=jnp.float32)
    b0 = jnp.zeros((1,), dtype=jnp.float32)
    out0 = jax.block_until_ready(layernorm_pallas(x, w0, b0, eps=1e-5))
    assert jnp.allclose(out0, layernorm_ref(x, w0, b0, eps=1e-5), atol=1e-5, rtol=1e-5)

    print("KERNEL_OK")
</pallas_src>

<mosaic_0001>
module attributes {stable_mosaic.version = 11 : i64} {
  func.func @_layernorm_kernel(%arg0: i32, %arg1: memref<1xf32, #tpu.memory_space<smem>>, %arg2: memref<1xf32, #tpu.memory_space<smem>>, %arg3: memref<32x20xf32, #tpu.memory_space<vmem>>, %arg4: memref<32x20xf32, #tpu.memory_space<vmem>>) attributes {dimension_semantics = [#tpu.dimension_semantics<parallel>], iteration_bounds = array<i64: 2>, scalar_prefetch = 0 : i64, scratch_operands = 0 : i64, tpu.core_type = #tpu.core_type<tc>, window_params = [{transform_indices = @transform_0, window_bounds = array<i64: 1>}, {transform_indices = @transform_1, window_bounds = array<i64: 1>}, {transform_indices = @transform_2, window_bounds = array<i64: 32, 20>}, {transform_indices = @transform_3, window_bounds = array<i64: 32, 20>}]} {
    %c0 = arith.constant 0 : index
    %0 = memref.load %arg1[%c0] : memref<1xf32, #tpu.memory_space<smem>>
    %c0_0 = arith.constant 0 : index
    %1 = memref.load %arg2[%c0_0] : memref<1xf32, #tpu.memory_space<smem>>
    %c0_1 = arith.constant 0 : index
    %c0_2 = arith.constant 0 : index
    %2 = vector.load %arg3[%c0_1, %c0_2] : memref<32x20xf32, #tpu.memory_space<vmem>>, vector<32x20xf32>
    %cst = arith.constant dense<0.000000e+00> : vector<32xf32>
    %3 = vector.multi_reduction <add>, %2, %cst [1] : vector<32x20xf32> to vector<32xf32>
    %4 = vector.shape_cast %3 : vector<32xf32> to vector<32x1xf32>
    %cst_3 = arith.constant 5.000000e-02 : f32
    %5 = vector.broadcast %cst_3 : f32 to vector<32x1xf32>
    %6 = arith.mulf %4, %5 : vector<32x1xf32>
    %7 = vector.broadcast %6 : vector<32x1xf32> to vector<32x20xf32>
    %8 = arith.subf %2, %7 : vector<32x20xf32>
    %9 = arith.mulf %8, %8 : vector<32x20xf32>
    %cst_4 = arith.constant dense<0.000000e+00> : vector<32xf32>
    %10 = vector.multi_reduction <add>, %9, %cst_4 [1] : vector<32x20xf32> to vector<32xf32>
    %11 = vector.shape_cast %10 : vector<32xf32> to vector<32x1xf32>
    %cst_5 = arith.constant 0.0526315793 : f32
    %12 = vector.broadcast %cst_5 : f32 to vector<32x1xf32>
    %13 = arith.mulf %11, %12 : vector<32x1xf32>
    %14 = math.sqrt %13 : vector<32x1xf32>
    %cst_6 = arith.constant 9.99999974E-6 : f32
    %15 = vector.broadcast %cst_6 : f32 to vector<32x1xf32>
    %16 = arith.addf %14, %15 : vector<32x1xf32>
    %17 = vector.broadcast %1 : f32 to vector<32x1xf32>
    %18 = arith.divf %17, %16 : vector<32x1xf32>
    %19 = vector.broadcast %18 : vector<32x1xf32> to vector<32x20xf32>
    %20 = arith.mulf %8, %19 : vector<32x20xf32>
    %21 = vector.broadcast %0 : f32 to vector<32x20xf32>
    %22 = arith.addf %20, %21 : vector<32x20xf32>
    %c0_7 = arith.constant 0 : index
    %c0_8 = arith.constant 0 : index
    %23 = vector.load %arg4[%c0_7, %c0_8] : memref<32x20xf32, #tpu.memory_space<vmem>>, vector<32x20xf32>
    tpu.vector_store %arg4[%c0_7, %c0_8], %22 {strides = array<i32>} : memref<32x20xf32, #tpu.memory_space<vmem>>, vector<32x20xf32>,
    return
  }
  func.func @transform_0(%arg0: i32) -> i32 {
    %c0_i32 = arith.constant 0 : i32
    %c0_i32_0 = arith.constant 0 : i32
    return %c0_i32 : i32
  }
  func.func @transform_1(%arg0: i32) -> i32 {
    %c0_i32 = arith.constant 0 : i32
    %c0_i32_0 = arith.constant 0 : i32
    return %c0_i32 : i32
  }
  func.func @transform_2(%arg0: i32) -> (i32, i32) {
    %c0_i32 = arith.constant 0 : i32
    %c0_i32_0 = arith.constant 0 : i32
    return %arg0, %c0_i32 : i32, i32
  }
  func.func @transform_3(%arg0: i32) -> (i32, i32) {
    %c0_i32 = arith.constant 0 : i32
    %c0_i32_0 = arith.constant 0 : i32
    return %arg0, %c0_i32 : i32, i32
  }
}

</mosaic_0001>

<llo_original>
// kernel: tpu_custom_call.1
$region0: #{tpu_custom_call.1}
  #allocation0 [shape = 'u32[]', space=smem, size = 0x4, offset = 0x4, fixed_abs, tag = 'smem constant byte address 0x4 - core index']
  #allocation1 [shape = 'u32[72,128]{1,0:T(1,128)}', space=vmem, size = 0x9000, scoped, tag = 'internal scratch']
  #allocation2 [shape = 'f32[1]{0:T(128)S(6)}', space=smem, size = 0x200, scoped, tag = 'scoped memory for tpu_custom_call.1']
  #allocation3 [shape = 'f32[1]{0:T(128)S(6)}', space=smem, size = 0x200, scoped, tag = 'scoped memory for tpu_custom_call.1']
  %s0 = inlined_call_operand.<no memory space> [shape: f32[1], index: 0, kind: input, shape index: {}]
  %s1 = inlined_call_operand.<no memory space> [shape: f32[1], index: 1, kind: input, shape index: {}]
  %s2 = inlined_call_operand.vmem [shape: f32[64,20], index: 2, kind: input, shape index: {}]
  %s3 = inlined_call_operand.vmem [shape: f32[64,20], index: 3, kind: output, shape index: {}]
  %s4 = sld [smem:[#allocation0]]
  $region45: #{tpu_custom_call.1} parent=0
    _
  %s6 = ssub.s32 1, %s4
  %s7 = scalar_select 0, %s6, %s4
  %8 = sst [smem:[#allocation2]] %s0
  %9 = sst [smem:[#allocation3]] %s1
  loop: start=0, step=1, limit=4
  $region2: #{tpu_custom_call.1} parent=0 // loop_pre_header
    _
  $region3: #{tpu_custom_call.1} parent=0 // loop_header
    %s11 = sphi 0, %s15
    %p12 = scmp.ge.s32.totalorder %s11, 4
    %s19 = sphi 0, %s19
    %s21 = sphi 0, %s19
    %s22 = sphi 0, %s21
    %s36 = sphi 0, %s22
    %s40 = sphi 0, %s40
    %s42 = sphi 0, %s40
    %s43 = sphi 0, %s42
    %s57 = sphi 0, %s43
    %s63 = sphi 0, %s65
    %s66 = sphi 0, %s63
    %s67 = sphi 0, %s66
    %s83 = sphi 0, %s67
    %s89 = sphi 0, %s91
    %s92 = sphi 0, %s89
    %s93 = sphi 0, %s92
    %s109 = sphi 0, %s93
  $region4: #{tpu_custom_call.1} parent=0 // loop_header_branch
    %14 = sbr.rel (%p12) target = $region8
  $region5: #{tpu_custom_call.1} parent=0 // loop_body
    %s16 = ssub.s32 %s11, 1
    %s17 = ssub.s32 %s11, 2
    %s18 = sadd.s32 %s11, 1
    %s20 = sadd.s32 %s19, 1
    %p23 = scmp.eq.s32.totalorder %s11, 1
    %p24 = scmp.ne.s32.totalorder %s19, %s21
    %p25 = scmp.eq.s32.totalorder %s11, 0
    %p26 = por %p24, %p25
    %p27 = scmp.ne.s32.totalorder %s19, %s21
    %p28 = scmp.eq.s32.totalorder %s16, 1
    %p29 = por %p27, %p28
    %p30 = scmp.ne.s32.totalorder %s21, %s22
    %p31 = scmp.eq.s32.totalorder %s16, 0
    %p32 = por %p30, %p31
    %p33 = scmp.ne.s32.totalorder %s21, %s22
    %p34 = scmp.eq.s32.totalorder %s17, 1
    %p35 = por %p33, %p34
    %p37 = scmp.ne.s32.totalorder %s22, %s36
    %p38 = scmp.eq.s32.totalorder %s17, 0
    %p39 = por %p37, %p38
    %s41 = sadd.s32 %s40, 1
    %p44 = scmp.eq.s32.totalorder %s11, 1
    %p45 = scmp.ne.s32.totalorder %s40, %s42
    %p46 = scmp.eq.s32.totalorder %s11, 0
    %p47 = por %p45, %p46
    %p48 = scmp.ne.s32.totalorder %s40, %s42
    %p49 = scmp.eq.s32.totalorder %s16, 1
    %p50 = por %p48, %p49
    %p51 = scmp.ne.s32.totalorder %s42, %s43
    %p52 = scmp.eq.s32.totalorder %s16, 0
    %p53 = por %p51, %p52
    %p54 = scmp.ne.s32.totalorder %s42, %s43
    %p55 = scmp.eq.s32.totalorder %s17, 1
    %p56 = por %p54, %p55
    %p58 = scmp.ne.s32.totalorder %s43, %s57
    %p59 = scmp.eq.s32.totalorder %s17, 0
    %p60 = por %p58, %p59
    %s61 = ssub.s32 %s11, %s18
    %p62 = scmp.eq.s32.totalorder %s61, 0
    %s64 = sadd.s32 %s63, 1
    %s65 = scalar_select %p62, %s63, %s64
    %p68 = pneg %p62
    %p69 = scmp.eq.s32.totalorder %s11, 1
    %p70 = por %p68, %p69
    %p71 = scmp.ne.s32.totalorder %s63, %s66
    %p72 = scmp.eq.s32.totalorder %s11, 0
    %p73 = por %p71, %p72
    %p74 = scmp.ne.s32.totalorder %s63, %s66
    %p75 = scmp.eq.s32.totalorder %s16, 1
    %p76 = por %p74, %p75
    %p77 = scmp.ne.s32.totalorder %s66, %s67
    %p78 = scmp.eq.s32.totalorder %s16, 0
    %p79 = por %p77, %p78
    %p80 = scmp.ne.s32.totalorder %s66, %s67
    %p81 = scmp.eq.s32.totalorder %s17, 1
    %p82 = por %p80, %p81
    %p84 = scmp.ne.s32.totalorder %s67, %s83
    %p85 = scmp.eq.s32.totalorder %s17, 0
    %p86 = por %p84, %p85
    %s87 = ssub.s32 %s11, %s18
    %p88 = scmp.eq.s32.totalorder %s87, 0
    %s90 = sadd.s32 %s89, 1
    %s91 = scalar_select %p88, %s89, %s90
    %p94 = pneg %p88
    %p95 = scmp.eq.s32.totalorder %s11, 1
    %p96 = por %p94, %p95
    %p97 = scmp.ne.s32.totalorder %s89, %s92
    %p98 = scmp.eq.s32.totalorder %s11, 0
    %p99 = por %p97, %p98
    %p100 = scmp.ne.s32.totalorder %s89, %s92
    %p101 = scmp.eq.s32.totalorder %s16, 1
    %p102 = por %p100, %p101
    %p103 = scmp.ne.s32.totalorder %s92, %s93
    %p104 = scmp.eq.s32.totalorder %s16, 0
    %p105 = por %p103, %p104
    %p106 = scmp.ne.s32.totalorder %s92, %s93
    %p107 = scmp.eq.s32.totalorder %s17, 1
    %p108 = por %p106, %p107
    %p110 = scmp.ne.s32.totalorder %s93, %s109
    %p111 = scmp.eq.s32.totalorder %s17, 0
    %p112 = por %p110, %p111
    %p113 = scmp.le.s32.totalorder 1, %s11
    %p114 = scmp.lt.s32.totalorder %s11, 3
    %p115 = pnand %p113, %p114
    %p116 = pneg %p115
    // Predicated region
    $region9: #{tpu_custom_call.1} parent=5 // pred_check
      _
    $region10: #{tpu_custom_call.1} parent=5 // pred_check_branch
      %118 = sbr.rel (%p115) target = $region12
    $region11: #{tpu_custom_call.1} parent=5 // pred_region
      %s119 = ssub.s32 %s11, 1
      // Predicated region
      $region13: #{tpu_custom_call.1} parent=11 // pred_check
        %p120 = pneg %p32
      $region14: #{tpu_custom_call.1} parent=11 // pred_check_branch
        %122 = sbr.rel (%p120) target = $region16
      $region15: #{tpu_custom_call.1} parent=11 // pred_region
        _
      $region16: #{tpu_custom_call.1} parent=11 // pred_fallthru
        _
      // Predicated region
      $region17: #{tpu_custom_call.1} parent=11 // pred_check
        %p123 = pneg %p53
      $region18: #{tpu_custom_call.1} parent=11 // pred_check_branch
        %125 = sbr.rel (%p123) target = $region20
      $region19: #{tpu_custom_call.1} parent=11 // pred_region
        _
      $region20: #{tpu_custom_call.1} parent=11 // pred_fallthru
        _
    $region12: #{tpu_custom_call.1} parent=5 // pred_fallthru
      _
    %p126 = scmp.lt.s32.totalorder %s11, 2
    // Predicated region
    $region21: #{tpu_custom_call.1} parent=5 // pred_check
      %p127 = pneg %p126
    $region22: #{tpu_custom_call.1} parent=5 // pred_check_branch
      %129 = sbr.rel (%p127) target = $region24
    $region23: #{tpu_custom_call.1} parent=5 // pred_region
      // Predicated region
      $region25: #{tpu_custom_call.1} parent=23 // pred_check
        %p130 = pneg %p73
      $region26: #{tpu_custom_call.1} parent=23 // pred_check_branch
        %132 = sbr.rel (%p130) target = $region28
      $region27: #{tpu_custom_call.1} parent=23 // pred_region
        %s133 = smul.u32 4, %s11
        %p134 = scmp.lt.s32.totalorder %s133, 7
        %s135 = scalar_select %p134, %s133, 7
        %s136 = smul.addr %s135, 8
        %s137 = scalar_lea.vmem %s2, %s136
        %s138 = smul.u32 4, %s11
      $region28: #{tpu_custom_call.1} parent=23 // pred_fallthru
        _
    $region24: #{tpu_custom_call.1} parent=5 // pred_fallthru
      _
    %p139 = scmp.le.s32.totalorder 1, %s11
    %p140 = scmp.lt.s32.totalorder %s11, 3
    %p141 = pnand %p139, %p140
    %p142 = pneg %p141
    // Predicated region
    $region29: #{tpu_custom_call.1} parent=5 // pred_check
      _
    $region30: #{tpu_custom_call.1} parent=5 // pred_check_branch
      %144 = sbr.rel (%p141) target = $region32
    $region31: #{tpu_custom_call.1} parent=5 // pred_region
      %s145 = ssub.s32 %s11, 1
      %p146 = pneg %p32
      %p147 = pneg %p29
      %p148 = pneg %p53
      %p149 = pneg %p50
      %s150 = smul.u32 4, %s16
      %p151 = scmp.lt.s32.totalorder %s150, 7
      %s152 = scalar_select %p151, %s150, 7
      %s153 = smul.addr %s152, 8
      %s154 = scalar_lea.vmem %s2, %s153
      %p155 = pneg %p79
      %p156 = pneg %p76
      %p157 = pneg %p105
      %p158 = pneg %p102
      %s159 = smul.u32 4, %s16
      %p160 = scmp.lt.s32.totalorder %s159, 7
      %s161 = scalar_select %p160, %s159, 7
      %s162 = smul.addr %s161, 8
      %s163 = scalar_lea.vmem %s3, %s162
      %s164 = smul.u32 4, %s16
      %p165 = scmp.lt.s32.totalorder %s164, 7
      %s166 = scalar_select %p165, %s164, 7
      %s167 = smul.addr %s166, 8
      %s168 = scalar_lea.vmem %s2, %s167
      %s169 = smul.u32 4, %s16
      %s170 = smul.u32 4, %s16
      %p171 = scmp.lt.s32.totalorder %s170, 7
      %s172 = scalar_select %p171, %s170, 7
      %s173 = smul.addr %s172, 8
      %s174 = scalar_lea.vmem %s3, %s173
      %s175 = smul.u32 4, %s16
      %s176 = sld [smem:[#allocation2]]
      %s177 = sld [smem:[#allocation3]]
      %v178 = vld [vmem:[%s168] sm:$0xff]
      %v179 = vld [vmem:[%s168 + $0x8] sm:$0xff]
      %v180 = vld [vmem:[%s168 + $0x10] sm:$0xff]
      %v181 = vld [vmem:[%s168 + $0x18] sm:$0xff]
      %vm182 = vcmask 162816
      %v183 = vsel %vm182, %v178, 0.0
      %184 = vadd.xlane.f32.xlu0 %v183
      %v185 = vpop.xlane.xlu0 %184
      %v186 = vsel %vm182, %v179, 0.0
      %187 = vadd.xlane.f32.xlu0 %v186
      %v188 = vpop.xlane.xlu0 %187
      %v189 = vsel %vm182, %v180, 0.0
      %190 = vadd.xlane.f32.xlu0 %v189
      %v191 = vpop.xlane.xlu0 %190
      %v192 = vsel %vm182, %v181, 0.0
      %193 = vadd.xlane.f32.xlu0 %v192
      %v194 = vpop.xlane.xlu0 %193
      %v195 = vmul.f32 %v185, 0.05
      %v196 = vmul.f32 %v188, 0.05
      %v197 = vmul.f32 %v191, 0.05
      %v198 = vmul.f32 %v194, 0.05
      %v199 = vsub.f32 %v178, %v195
      %v200 = vsub.f32 %v179, %v196
      %v201 = vsub.f32 %v180, %v197
      %v202 = vsub.f32 %v181, %v198
      %v203 = vmul.f32 %v199, %v199
      %v204 = vmul.f32 %v200, %v200
      %v205 = vmul.f32 %v201, %v201
      %v206 = vmul.f32 %v202, %v202
      %v207 = vsel %vm182, %v203, 0.0
      %208 = vadd.xlane.f32.xlu0 %v207
      %v209 = vpop.xlane.xlu0 %208
      %v210 = vsel %vm182, %v204, 0.0
      %211 = vadd.xlane.f32.xlu0 %v210
      %v212 = vpop.xlane.xlu0 %211
      %v213 = vsel %vm182, %v205, 0.0
      %214 = vadd.xlane.f32.xlu0 %v213
      %v215 = vpop.xlane.xlu0 %214
      %v216 = vsel %vm182, %v206, 0.0
      %217 = vadd.xlane.f32.xlu0 %v216
      %v218 = vpop.xlane.xlu0 %217
      %v219 = vmul.f32 %v209, 0.05263158
      %v220 = vmul.f32 %v212, 0.05263158
      %v221 = vmul.f32 %v215, 0.05263158
      %v222 = vmul.f32 %v218, 0.05263158
      %v223 = vrsqrt.pop %v219
      %v224 = vmul.f32 %v223, %v219
      %v225 = vmul.f32 %v224, %v223
      %v226 = vmul.f32 0.5, %v225
      %v227 = vsub.f32 1.5, %v226
      %v228 = vmul.f32 %v223, %v227
      %v229 = vmul.f32 %v219, %v228
      %vm230 = vcmp.eq.f32.partialorder %v219, inf
      %v231 = vsel %vm230, %v219, %v229
      %vm232 = vcmp.eq.f32.partialorder %v219, 0.0
      %v233 = vand.u32 %v219, 2147483648
      %v234 = vsel %vm232, %v233, %v231
      %v235 = vrsqrt.pop %v220
      %v236 = vmul.f32 %v235, %v220
      %v237 = vmul.f32 %v236, %v235
      %v238 = vmul.f32 0.5, %v237
      %v239 = vsub.f32 1.5, %v238
      %v240 = vmul.f32 %v235, %v239
      %v241 = vmul.f32 %v220, %v240
      %vm242 = vcmp.eq.f32.partialorder %v220, inf
      %v243 = vsel %vm242, %v220, %v241
      %vm244 = vcmp.eq.f32.partialorder %v220, 0.0
      %v245 = vand.u32 %v220, 2147483648
      %v246 = vsel %vm244, %v245, %v243
      %v247 = vrsqrt.pop %v221
      %v248 = vmul.f32 %v247, %v221
      %v249 = vmul.f32 %v248, %v247
      %v250 = vmul.f32 0.5, %v249
      %v251 = vsub.f32 1.5, %v250
      %v252 = vmul.f32 %v247, %v251
      %v253 = vmul.f32 %v221, %v252
      %vm254 = vcmp.eq.f32.partialorder %v221, inf
      %v255 = vsel %vm254, %v221, %v253
      %vm256 = vcmp.eq.f32.partialorder %v221, 0.0
      %v257 = vand.u32 %v221, 2147483648
      %v258 = vsel %vm256, %v257, %v255
      %v259 = vrsqrt.pop %v222
      %v260 = vmul.f32 %v259, %v222
      %v261 = vmul.f32 %v260, %v259
      %v262 = vmul.f32 0.5, %v261
      %v263 = vsub.f32 1.5, %v262
      %v264 = vmul.f32 %v259, %v263
      %v265 = vmul.f32 %v222, %v264
      %vm266 = vcmp.eq.f32.partialorder %v222, inf
      %v267 = vsel %vm266, %v222, %v265
      %vm268 = vcmp.eq.f32.partialorder %v222, 0.0
      %v269 = vand.u32 %v222, 2147483648
      %v270 = vsel %vm268, %v269, %v267
      %v271 = vadd.f32 %v234, 1e-05
      %v272 = vadd.f32 %v246, 1e-05
      %v273 = vadd.f32 %v258, 1e-05
      %v274 = vadd.f32 %v270, 1e-05
      %v275 = vstv %s177
      %v276 = vrcp.pop %v271
      %v277 = vmul.f32 %v271, %v276
      %v278 = vsub.f32 1.0, %v277
      %v279 = vmul.f32 %v276, %v278
      %v280 = vadd.f32 %v276, %v279
      %vm281 = vweird.f32 %v271
      %vm282 = vweird.f32 %v276
      %vm283 = vmor %vm281, %vm282
      %v284 = vsel %vm283, %v276, %v280
      %v285 = vand.u32 2147483647, %v271
      %vm286 = vcmp.eq.f32.partialorder %v285, 8.507059e+37
      %v287 = vand.u32 %v271, 2147483648
      %v288 = vor.u32 1.1754944e-38, %v287
      %v289 = vsel %vm286, %v288, %v284
      %v290 = vmul.f32 %v275, %v289
      %v291 = vrcp.pop %v272
      %v292 = vmul.f32 %v272, %v291
      %v293 = vsub.f32 1.0, %v292
      %v294 = vmul.f32 %v291, %v293
      %v295 = vadd.f32 %v291, %v294
      %vm296 = vweird.f32 %v272
      %vm297 = vweird.f32 %v291
      %vm298 = vmor %vm296, %vm297
      %v299 = vsel %vm298, %v291, %v295
      %v300 = vand.u32 2147483647, %v272
      %vm301 = vcmp.eq.f32.partialorder %v300, 8.507059e+37
      %v302 = vand.u32 %v272, 2147483648
      %v303 = vor.u32 1.1754944e-38, %v302
      %v304 = vsel %vm301, %v303, %v299
      %v305 = vmul.f32 %v275, %v304
      %v306 = vrcp.pop %v273
      %v307 = vmul.f32 %v273, %v306
      %v308 = vsub.f32 1.0, %v307
      %v309 = vmul.f32 %v306, %v308
      %v310 = vadd.f32 %v306, %v309
      %vm311 = vweird.f32 %v273
      %vm312 = vweird.f32 %v306
      %vm313 = vmor %vm311, %vm312
      %v314 = vsel %vm313, %v306, %v310
      %v315 = vand.u32 2147483647, %v273
      %vm316 = vcmp.eq.f32.partialorder %v315, 8.507059e+37
      %v317 = vand.u32 %v273, 2147483648
      %v318 = vor.u32 1.1754944e-38, %v317
      %v319 = vsel %vm316, %v318, %v314
      %v320 = vmul.f32 %v275, %v319
      %v321 = vrcp.pop %v274
      %v322 = vmul.f32 %v274, %v321
      %v323 = vsub.f32 1.0, %v322
      %v324 = vmul.f32 %v321, %v323
      %v325 = vadd.f32 %v321, %v324
      %vm326 = vweird.f32 %v274
      %vm327 = vweird.f32 %v321
      %vm328 = vmor %vm326, %vm327
      %v329 = vsel %vm328, %v321, %v325
      %v330 = vand.u32 2147483647, %v274
      %vm331 = vcmp.eq.f32.partialorder %v330, 8.507059e+37
      %v332 = vand.u32 %v274, 2147483648
      %v333 = vor.u32 1.1754944e-38, %v332
      %v334 = vsel %vm331, %v333, %v329
      %v335 = vmul.f32 %v275, %v334
      %v336 = vmul.f32 %v199, %v290
      %v337 = vmul.f32 %v200, %v305
      %v338 = vmul.f32 %v201, %v320
      %v339 = vmul.f32 %v202, %v335
      %v340 = vstv %s176
      %v341 = vadd.f32 %v336, %v340
      %v342 = vadd.f32 %v337, %v340
      %v343 = vadd.f32 %v338, %v340
      %v344 = vadd.f32 %v339, %v340
      %345 = vst.msk [vmem:[%s174] sm:$0xff] %vm182, %v341
      %346 = vst.msk [vmem:[%s174 + $0x8] sm:$0xff] %vm182, %v342
      %347 = vst.msk [vmem:[%s174 + $0x10] sm:$0xff] %vm182, %v343
      %348 = vst.msk [vmem:[%s174 + $0x18] sm:$0xff] %vm182, %v344
      %s349 = smul.u32 4, %s16
      %p350 = scmp.lt.s32.totalorder %s349, 7
      %s351 = scalar_select %p350, %s349, 7
      %s352 = smul.addr %s351, 8
      %s353 = scalar_lea.vmem %s3, %s352
      // Predicated region
      $region33: #{tpu_custom_call.1} parent=31 // pred_check
        %p354 = pneg %p102
      $region34: #{tpu_custom_call.1} parent=31 // pred_check_branch
        %356 = sbr.rel (%p354) target = $region36
      $region35: #{tpu_custom_call.1} parent=31 // pred_region
        %s357 = smul.u32 4, %s16
      $region36: #{tpu_custom_call.1} parent=31 // pred_fallthru
        _
    $region32: #{tpu_custom_call.1} parent=5 // pred_fallthru
      _
    %p358 = scmp.le.s32.totalorder 2, %s11
    // Predicated region
    $region37: #{tpu_custom_call.1} parent=5 // pred_check
      %p359 = pneg %p358
    $region38: #{tpu_custom_call.1} parent=5 // pred_check_branch
      %361 = sbr.rel (%p359) target = $region40
    $region39: #{tpu_custom_call.1} parent=5 // pred_region
      %s362 = ssub.s32 %s11, 2
      // Predicated region
      $region41: #{tpu_custom_call.1} parent=39 // pred_check
        %p363 = pneg %p108
      $region42: #{tpu_custom_call.1} parent=39 // pred_check_branch
        %365 = sbr.rel (%p363) target = $region44
      $region43: #{tpu_custom_call.1} parent=39 // pred_region
        %s366 = smul.u32 4, %s17
        %p367 = scmp.lt.s32.totalorder %s366, 7
        %s368 = scalar_select %p367, %s366, 7
        %s369 = smul.addr %s368, 8
        %s370 = scalar_lea.vmem %s3, %s369
      $region44: #{tpu_custom_call.1} parent=39 // pred_fallthru
        _
    $region40: #{tpu_custom_call.1} parent=5 // pred_fallthru
      _
  $region6: #{tpu_custom_call.1} parent=0 // loop_footer
    %s15 = sadd.s32 1, %s11
  $region7: #{tpu_custom_call.1} parent=0 // loop_footer_branch
    %10 = sbr.rel target = $region3
  $region8: #{tpu_custom_call.1} parent=0 // loop_exit
    _

</llo_original>
